<compile_context>
chip_gen: v5e
topology: v5e:2x2
jax: 0.10.0
libtpu: 0.0.40
codegen_flags: <defaults>
</compile_context>

<pallas_src>
import functools

import numpy as np
import jax
import jax.numpy as jnp
from jax.experimental import pallas as pl
from jax.experimental.pallas import tpu as pltpu

N_HIDDEN = 64      # logical hidden width of the per-group MLP (module spec)
NH_PAD = 128       # zero-padded hidden width (lane dense; padded cols/rows are 0)
TOKEN_TILE = 256   # tokens per output tile (matches v6e/v7x MXU M dim)


def _round_up(x, m):
    return (x + m - 1) // m * m


# ----------------------------------------------------------------------------
# Fused kernel: grid point (token tile ti, compacted group slot gi).
#   gi == 0            -> init the VMEM-resident (TT, d_pad) output tile
#   gi <  count[ti]    -> run group g = present_gids[ti, gi]'s MLP on the
#                         pre-gathered anchor rows and select into the output.
# Weights of ALL groups are VMEM-resident (fetched once), sliced dynamically.
# ----------------------------------------------------------------------------
def _fused_kernel(pg_sref, cnt_sref, gid_ref, e_ref, w1_ref, b1_ref, w2_ref,
                  b2_ref, out_ref, *, max_present):
    ti = pl.program_id(0)
    gi = pl.program_id(1)

    # Output tile resident across the (innermost, "arbitrary") group axis.
    @pl.when(gi == 0)
    def _init():
        out_ref[...] = jnp.zeros_like(out_ref)

    g = pg_sref[ti * max_present + gi]          # actual group id (SMEM scalar)

    @pl.when(gi < cnt_sref[ti])                 # skip padded group slots
    def _process():
        w1 = w1_ref[g]                          # (s_pad, NH_PAD) bf16
        b1 = b1_ref[g]                          # (1, NH_PAD)     f32
        w2 = w2_ref[g]                          # (NH_PAD, d_pad) bf16
        b2 = b2_ref[g]                          # (1, d_pad)      f32

        # Linear -> ReLU -> Linear (bf16 on the MXU, f32 accumulate).
        h = jnp.dot(e_ref[...], w1, preferred_element_type=jnp.float32) + b1
        h = jnp.maximum(h, 0.0)                                      # (TT, NH_PAD) f32
        y = jnp.dot(h.astype(jnp.bfloat16), w2,
                    preferred_element_type=jnp.float32) + b2         # (TT, d_pad) f32

        # Each token belongs to exactly one group -> exact select, no accumulate.
        mask = gid_ref[...] == g                                     # (TT, 1) bool
        out_ref[...] = jnp.where(mask, y, out_ref[...])


# ----------------------------------------------------------------------------
# Parameter construction (deterministic, mirrors the module's __init__ shapes).
# Per-group tensors are stacked / zero-padded so one fused kernel can index
# them with a dynamic group id.
# ----------------------------------------------------------------------------
def make_variable_sized_embedding(embedding_sizes, embedding_dimension, key):
    sizes = np.asarray(embedding_sizes, dtype=np.int64)
    order = np.argsort(sizes, kind="stable")                  # torch.sort(...)
    inverse_indices = np.argsort(order, kind="stable")        # torch.argsort(indices)
    values = sizes[order]
    unique_sizes, counts = np.unique(values, return_counts=True)  # consecutive uniques
    starts = np.concatenate([[0], np.cumsum(counts)[:-1]]).astype(np.int64)
    n_groups = len(unique_sizes)
    n_entities = sizes.shape[0]

    # Static sorted-position -> (group, relative index) lookup tables.
    pos_to_group = np.zeros((n_entities,), np.int32)
    pos_to_rel = np.zeros((n_entities,), np.int32)
    for g in range(n_groups):
        st, ct = int(starts[g]), int(counts[g])
        pos_to_group[st:st + ct] = g
        pos_to_rel[st:st + ct] = np.arange(ct, dtype=np.int32)

    c_max = int(counts.max())
    s_pad = int(_round_up(int(unique_sizes.max()), 128))      # lane-dense anchor width
    d_pad = int(_round_up(int(embedding_dimension), 128))     # lane-dense output

    emb_all = np.zeros((n_groups, c_max, s_pad), np.float32)
    w1_all = np.zeros((n_groups, s_pad, NH_PAD), np.float32)
    b1_all = np.zeros((n_groups, 1, NH_PAD), np.float32)
    w2_all = np.zeros((n_groups, NH_PAD, d_pad), np.float32)
    b2_all = np.zeros((n_groups, 1, d_pad), np.float32)

    def xavier(k, shape):
        bound = float(np.sqrt(6.0 / (shape[0] + shape[1])))
        # np.asarray(...) on a jax array is read-only; take a writable copy.
        return np.asarray(jax.random.uniform(k, shape, jnp.float32, -bound, bound)).copy()

    for g in range(n_groups):
        usz, cnt = int(unique_sizes[g]), int(counts[g])
        key, k_emb, k_w1, k_b1, k_w2, k_b2 = jax.random.split(key, 6)
        e = xavier(k_emb, (cnt, usz))
        e[0, :] = 0.0                                         # nn.Embedding(padding_idx=0)
        emb_all[g, :cnt, :usz] = e
        w1_all[g, :usz, :N_HIDDEN] = xavier(k_w1, (usz, N_HIDDEN))   # Linear(usz, 64)^T
        b1_all[g, 0, :N_HIDDEN] = np.asarray(
            0.01 * jax.random.normal(k_b1, (N_HIDDEN,), jnp.float32))
        w2_all[g, :N_HIDDEN, :embedding_dimension] = xavier(
            k_w2, (N_HIDDEN, embedding_dimension))                   # Linear(64, D)^T
        b2_all[g, 0, :embedding_dimension] = np.asarray(
            0.01 * jax.random.normal(k_b2, (embedding_dimension,), jnp.float32))

    return dict(
        inverse_indices=jnp.asarray(inverse_indices, jnp.int32),
        pos_to_group=jnp.asarray(pos_to_group, jnp.int32),
        pos_to_rel=jnp.asarray(pos_to_rel, jnp.int32),
        starts=[int(x) for x in starts],
        counts=[int(x) for x in counts],
        embedding_dimension=int(embedding_dimension),
        emb_all=jnp.asarray(emb_all, jnp.bfloat16),            # gathered XLA-side
        w1_all=jnp.asarray(w1_all, jnp.bfloat16),              # bf16 MXU weights
        b1_all=jnp.asarray(b1_all, jnp.float32),
        w2_all=jnp.asarray(w2_all, jnp.bfloat16),
        b2_all=jnp.asarray(b2_all, jnp.float32),
    )


# ----------------------------------------------------------------------------
# Forward pass: wrapper-side anchor gather + one fused pallas_call over
# (token tiles, present groups per tile).
# ----------------------------------------------------------------------------
def variable_sized_embedding_forward(input_ids, params, token_tile=TOKEN_TILE):
    b, s = input_ids.shape
    d = params["embedding_dimension"]
    n_entities = params["inverse_indices"].shape[0]

    emb_all = params["emb_all"]
    w1_all, b1_all = params["w1_all"], params["b1_all"]
    w2_all, b2_all = params["w2_all"], params["b2_all"]
    n_groups, c_max, s_pad = emb_all.shape
    d_pad = w2_all.shape[-1]

    # input[input == num_entities] = 0, then id -> sorted pos -> (group, row).
    ids = jnp.where(input_ids == n_entities, 0, input_ids).reshape(-1)
    inv = jnp.take(params["inverse_indices"], ids, axis=0)
    gid = jnp.take(params["pos_to_group"], inv, axis=0).astype(jnp.int32)
    rel = jnp.take(params["pos_to_rel"], inv, axis=0).astype(jnp.int32)

    t = b * s
    t_pad = _round_up(max(t, 1), token_tile)
    n_tiles = t_pad // token_tile
    gid_p = jnp.pad(gid, (0, t_pad - t), constant_values=-1)   # padded tokens: no group
    rel_p = jnp.pad(rel, (0, t_pad - t), constant_values=0)

    # XLA-side 2-level gather of per-token anchor rows -> lane-dense bf16 tensor.
    flat_emb = emb_all.reshape(n_groups * c_max, s_pad)
    flat_idx = jnp.maximum(gid_p, 0) * c_max + rel_p
    e_tok = jnp.take(flat_emb, flat_idx, axis=0)               # (t_pad, s_pad) bf16

    # Per-tile compacted present-group lists (scatter -> no O(T*G) intermediate).
    max_present = int(min(n_groups, token_tile))
    tile_idx = jnp.arange(t_pad, dtype=jnp.int32) // token_tile
    gid_scatter = jnp.where(gid_p >= 0, gid_p, n_groups)       # OOB -> dropped
    flags = jnp.zeros((n_tiles, n_groups), jnp.int32).at[
        tile_idx, gid_scatter].max(jnp.ones((t_pad,), jnp.int32), mode="drop")
    cnts = flags.sum(axis=1).astype(jnp.int32)                 # (n_tiles,)
    gidx = jnp.arange(n_groups, dtype=jnp.int32)
    sort_key = jnp.where(flags > 0, gidx[None, :], n_groups + gidx[None, :])
    perm = jnp.argsort(sort_key, axis=1).astype(jnp.int32)     # present groups first
    pg = perm[:, :max_present]
    last_gid = jnp.take_along_axis(perm, jnp.maximum(cnts - 1, 0)[:, None], axis=1)
    slot = jnp.arange(max_present, dtype=jnp.int32)[None, :]
    # Padded slots repeat the last present group id -> consecutive identical
    # block indices -> no extra DMA; compute is skipped via cnt check.
    pg = jnp.where(slot < jnp.maximum(cnts, 1)[:, None], pg, last_gid)
    pg_flat = pg.reshape(-1).astype(jnp.int32)

    gid_col = gid_p.reshape(t_pad, 1)

    kernel = functools.partial(_fused_kernel, max_present=max_present)

    grid_spec = pltpu.PrefetchScalarGridSpec(
        num_scalar_prefetch=2,                       # present gids, per-tile counts (SMEM)
        grid=(n_tiles, max_present),                 # group axis innermost / "arbitrary"
        in_specs=[
            # per-token group ids and pre-gathered anchor rows: one block per tile
            pl.BlockSpec((token_tile, 1), lambda ti, gi, pg_r, cnt_r: (ti, 0)),
            pl.BlockSpec((token_tile, s_pad), lambda ti, gi, pg_r, cnt_r: (ti, 0)),
            # all-group MLP weights hoisted into VMEM once (constant index map)
            pl.BlockSpec((n_groups, s_pad, NH_PAD), lambda ti, gi, pg_r, cnt_r: (0, 0, 0)),
            pl.BlockSpec((n_groups, 1, NH_PAD), lambda ti, gi, pg_r, cnt_r: (0, 0, 0)),
            pl.BlockSpec((n_groups, NH_PAD, d_pad), lambda ti, gi, pg_r, cnt_r: (0, 0, 0)),
            pl.BlockSpec((n_groups, 1, d_pad), lambda ti, gi, pg_r, cnt_r: (0, 0, 0)),
        ],
        out_specs=pl.BlockSpec((token_tile, d_pad), lambda ti, gi, pg_r, cnt_r: (ti, 0)),
    )

    # VMEM estimate (double-buffered blocks + hoisted weights), capped at 48 MiB
    # to keep headroom on v7x's 64 MiB VMEM.
    est = 2 * (token_tile * 4                                   # gid (int32)
               + token_tile * s_pad * 2                         # gathered rows (bf16)
               + n_groups * (s_pad * NH_PAD * 2 + NH_PAD * 4
                             + NH_PAD * d_pad * 2 + d_pad * 4)  # hoisted weights
               + token_tile * d_pad * 4)                        # resident output tile
    vmem_limit = int(min(48 * 1024 * 1024, max(16 * 1024 * 1024, 4 * est)))

    out = pl.pallas_call(
        kernel,
        out_shape=jax.ShapeDtypeStruct((t_pad, d_pad), jnp.float32),
        grid_spec=grid_spec,
        compiler_params=pltpu.CompilerParams(
            dimension_semantics=("parallel", "arbitrary"),
            vmem_limit_bytes=vmem_limit,
        ),
    )(pg_flat, cnts, gid_col, e_tok, w1_all, b1_all, w2_all, b2_all)

    return out[:t, :d].reshape(b, s, d)


# ----------------------------------------------------------------------------
# Pure-JAX reference (mirrors the torch forward's per-group mask/scatter loop,
# with the same bf16 parameter/activation rounding as the kernel).
# ----------------------------------------------------------------------------
def variable_sized_embedding_ref(input_ids, params):
    b, s = input_ids.shape
    d = params["embedding_dimension"]
    n_entities = params["inverse_indices"].shape[0]
    hi = jax.lax.Precision.HIGHEST

    ids = jnp.where(input_ids == n_entities, 0, input_ids)
    inv = jnp.take(params["inverse_indices"], ids, axis=0)
    out = jnp.zeros((b, s, d), jnp.float32)
    for g in range(len(params["starts"])):
        start, count = params["starts"][g], params["counts"][g]
        mask = jnp.logical_and(inv >= start, inv < start + count)
        relg = jnp.clip(inv - start, 0, count - 1)
        e = jnp.take(params["emb_all"][g], relg, axis=0).astype(jnp.float32)
        w1 = params["w1_all"][g].astype(jnp.float32)
        w2 = params["w2_all"][g].astype(jnp.float32)
        h = jnp.einsum("bsk,kh->bsh", e, w1, precision=hi) + params["b1_all"][g, 0]
        h = jnp.maximum(h, 0.0)
        hb = h.astype(jnp.bfloat16).astype(jnp.float32)
        y = jnp.einsum("bsh,hd->bsd", hb, w2, precision=hi) + params["b2_all"][g, 0]
        out = jnp.where(mask[..., None], y[..., :d], out)
    return out


if __name__ == "__main__":
    key = jax.random.PRNGKey(0)
    key, k_params, k_ids = jax.random.split(key, 3)

    # 10 entities with variable embedding sizes {8, 16}; output embedding dim 32.
    embedding_sizes = np.array([8, 16, 8, 16, 8, 8, 16, 8, 16, 16])
    embedding_dimension = 32
    params = make_variable_sized_embedding(embedding_sizes, embedding_dimension, k_params)

    # input: (batch=2, seq=8) entity ids in [0, 10]; id == 10 (== num_entities)
    # exercises the remap-to-0 path.
    n_entities = embedding_sizes.shape[0]
    input_ids = jax.random.randint(k_ids, (2, 8), 0, n_entities + 1, dtype=jnp.int32)

    out = variable_sized_embedding_forward(input_ids, params)
    out = jax.block_until_ready(out)

    ref = variable_sized_embedding_ref(input_ids, params)
    np.testing.assert_allclose(np.asarray(out), np.asarray(ref), rtol=5e-3, atol=2e-3)
    assert out.shape == (2, 8, embedding_dimension) and out.dtype == jnp.float32

    print("KERNEL_OK")
</pallas_src>

<mosaic_0001>
module attributes {stable_mosaic.version = 11 : i64} {
  func.func @_fused_kernel(%arg0: i32, %arg1: i32, %arg2: memref<2xi32, #tpu.memory_space<smem>>, %arg3: memref<1xi32, #tpu.memory_space<smem>>, %arg4: memref<256x1xi32, #tpu.memory_space<vmem>>, %arg5: memref<256x128xbf16, #tpu.memory_space<vmem>>, %arg6: memref<2x128x128xbf16, #tpu.memory_space<vmem>>, %arg7: memref<2x1x128xf32, #tpu.memory_space<vmem>>, %arg8: memref<2x128x128xbf16, #tpu.memory_space<vmem>>, %arg9: memref<2x1x128xf32, #tpu.memory_space<vmem>>, %arg10: memref<256x128xf32, #tpu.memory_space<vmem>>) attributes {dimension_semantics = [#tpu.dimension_semantics<parallel>, #tpu.dimension_semantics<arbitrary>], iteration_bounds = array<i64: 1, 2>, scalar_prefetch = 2 : i64, scratch_operands = 0 : i64, tpu.core_type = #tpu.core_type<tc>, window_params = [{transform_indices = @transform_0, window_bounds = array<i64: 256, 1>}, {transform_indices = @transform_1, window_bounds = array<i64: 256, 128>}, {pipeline_mode = #tpu.pipeline_mode<synchronous>, transform_indices = @transform_2, window_bounds = array<i64: 2, 128, 128>}, {pipeline_mode = #tpu.pipeline_mode<synchronous>, transform_indices = @transform_3, window_bounds = array<i64: 2, 1, 128>}, {pipeline_mode = #tpu.pipeline_mode<synchronous>, transform_indices = @transform_4, window_bounds = array<i64: 2, 128, 128>}, {pipeline_mode = #tpu.pipeline_mode<synchronous>, transform_indices = @transform_5, window_bounds = array<i64: 2, 1, 128>}, {transform_indices = @transform_6, window_bounds = array<i64: 256, 128>}]} {
    %c0_i32 = arith.constant 0 : i32
    %0 = arith.cmpi eq, %arg1, %c0_i32 : i32
    %1 = arith.extui %0 : i1 to i32
    %c0_i32_0 = arith.constant 0 : i32
    %2 = arith.cmpi ne, %1, %c0_i32_0 : i32
    scf.if %2 {
      %cst = arith.constant 0.000000e+00 : f32
      %12 = vector.broadcast %cst : f32 to vector<256x128xf32>
      %c0 = arith.constant 0 : index
      %c0_2 = arith.constant 0 : index
      %13 = vector.load %arg10[%c0, %c0_2] : memref<256x128xf32, #tpu.memory_space<vmem>>, vector<256x128xf32>
      tpu.vector_store %arg10[%c0, %c0_2], %12 {strides = array<i32>} : memref<256x128xf32, #tpu.memory_space<vmem>>, vector<256x128xf32>,
    } else {
    }
    %c2_i32 = arith.constant 2 : i32
    %3 = arith.muli %arg0, %c2_i32 : i32
    %4 = arith.addi %3, %arg1 : i32
    %5 = arith.index_cast %4 : i32 to index
    %6 = memref.load %arg2[%5] : memref<2xi32, #tpu.memory_space<smem>>
    %7 = arith.index_cast %arg0 : i32 to index
    %8 = memref.load %arg3[%7] : memref<1xi32, #tpu.memory_space<smem>>
    %9 = arith.cmpi slt, %arg1, %8 : i32
    %10 = arith.extui %9 : i1 to i32
    %c0_i32_1 = arith.constant 0 : i32
    %11 = arith.cmpi ne, %10, %c0_i32_1 : i32
    scf.if %11 {
      %12 = arith.index_cast %6 : i32 to index
      %c0 = arith.constant 0 : index
      %c0_2 = arith.constant 0 : index
      %13 = vector.load %arg6[%12, %c0, %c0_2] : memref<2x128x128xbf16, #tpu.memory_space<vmem>>, vector<1x128x128xbf16>
      %14 = vector.shape_cast %13 : vector<1x128x128xbf16> to vector<128x128xbf16>
      %15 = arith.index_cast %6 : i32 to index
      %c0_3 = arith.constant 0 : index
      %c0_4 = arith.constant 0 : index
      %16 = vector.load %arg7[%15, %c0_3, %c0_4] : memref<2x1x128xf32, #tpu.memory_space<vmem>>, vector<1x1x128xf32>
      %17 = vector.shape_cast %16 : vector<1x1x128xf32> to vector<1x128xf32>
      %18 = arith.index_cast %6 : i32 to index
      %c0_5 = arith.constant 0 : index
      %c0_6 = arith.constant 0 : index
      %19 = vector.load %arg8[%18, %c0_5, %c0_6] : memref<2x128x128xbf16, #tpu.memory_space<vmem>>, vector<1x128x128xbf16>
      %20 = vector.shape_cast %19 : vector<1x128x128xbf16> to vector<128x128xbf16>
      %21 = arith.index_cast %6 : i32 to index
      %c0_7 = arith.constant 0 : index
      %c0_8 = arith.constant 0 : index
      %22 = vector.load %arg9[%21, %c0_7, %c0_8] : memref<2x1x128xf32, #tpu.memory_space<vmem>>, vector<1x1x128xf32>
      %23 = vector.shape_cast %22 : vector<1x1x128xf32> to vector<1x128xf32>
      %c0_9 = arith.constant 0 : index
      %c0_10 = arith.constant 0 : index
      %24 = vector.load %arg5[%c0_9, %c0_10] : memref<256x128xbf16, #tpu.memory_space<vmem>>, vector<256x128xbf16>
      %cst = arith.constant dense<0.000000e+00> : vector<256x128xf32>
      %25 = tpu.matmul %24, %14, %cst {dimension_numbers = #tpu.dot_dimension_numbers<[1], [0], [0], [1], [0, 0, 1, 1], [], []>} : vector<256x128xbf16>, vector<128x128xbf16>, vector<256x128xf32> -> vector<256x128xf32>
      %26 = vector.broadcast %17 : vector<1x128xf32> to vector<256x128xf32>
      %27 = arith.addf %25, %26 : vector<256x128xf32>
      %cst_11 = arith.constant 0.000000e+00 : f32
      %28 = vector.broadcast %cst_11 : f32 to vector<256x128xf32>
      %29 = arith.maximumf %27, %28 : vector<256x128xf32>
      %30 = arith.truncf %29 : vector<256x128xf32> to vector<256x128xbf16>
      %cst_12 = arith.constant dense<0.000000e+00> : vector<256x128xf32>
      %31 = tpu.matmul %30, %20, %cst_12 {dimension_numbers = #tpu.dot_dimension_numbers<[1], [0], [0], [1], [0, 0, 1, 1], [], []>} : vector<256x128xbf16>, vector<128x128xbf16>, vector<256x128xf32> -> vector<256x128xf32>
      %32 = vector.broadcast %23 : vector<1x128xf32> to vector<256x128xf32>
      %33 = arith.addf %31, %32 : vector<256x128xf32>
      %c0_13 = arith.constant 0 : index
      %c0_14 = arith.constant 0 : index
      %34 = vector.load %arg4[%c0_13, %c0_14] : memref<256x1xi32, #tpu.memory_space<vmem>>, vector<256x1xi32>
      %35 = vector.broadcast %6 : i32 to vector<256x1xi32>
      %36 = arith.cmpi eq, %34, %35 : vector<256x1xi32>
      %c0_15 = arith.constant 0 : index
      %c0_16 = arith.constant 0 : index
      %37 = vector.load %arg10[%c0_15, %c0_16] : memref<256x128xf32, #tpu.memory_space<vmem>>, vector<256x128xf32>
      %38 = vector.shape_cast %36 : vector<256x1xi1> to vector<256x1xi1>
      %39 = vector.broadcast %38 : vector<256x1xi1> to vector<256x128xi1>
      %40 = arith.select %39, %33, %37 : vector<256x128xi1>, vector<256x128xf32>
      %c0_17 = arith.constant 0 : index
      %c0_18 = arith.constant 0 : index
      %41 = vector.load %arg10[%c0_17, %c0_18] : memref<256x128xf32, #tpu.memory_space<vmem>>, vector<256x128xf32>
      tpu.vector_store %arg10[%c0_17, %c0_18], %40 {strides = array<i32>} : memref<256x128xf32, #tpu.memory_space<vmem>>, vector<256x128xf32>,
    } else {
    }
    return
  }
  func.func @transform_0(%arg0: i32, %arg1: i32, %arg2: memref<2xi32, #tpu.memory_space<smem>>, %arg3: memref<1xi32, #tpu.memory_space<smem>>) -> (i32, i32) {
    %c0_i32 = arith.constant 0 : i32
    %c0_i32_0 = arith.constant 0 : i32
    return %arg0, %c0_i32 : i32, i32
  }
  func.func @transform_1(%arg0: i32, %arg1: i32, %arg2: memref<2xi32, #tpu.memory_space<smem>>, %arg3: memref<1xi32, #tpu.memory_space<smem>>) -> (i32, i32) {
    %c0_i32 = arith.constant 0 : i32
    %c0_i32_0 = arith.constant 0 : i32
    return %arg0, %c0_i32 : i32, i32
  }
  func.func @transform_2(%arg0: i32, %arg1: i32, %arg2: memref<2xi32, #tpu.memory_space<smem>>, %arg3: memref<1xi32, #tpu.memory_space<smem>>) -> (i32, i32, i32) {
    %c0_i32 = arith.constant 0 : i32
    %c0_i32_0 = arith.constant 0 : i32
    %c0_i32_1 = arith.constant 0 : i32
    %c0_i32_2 = arith.constant 0 : i32
    return %c0_i32, %c0_i32_0, %c0_i32_1 : i32, i32, i32
  }
  func.func @transform_3(%arg0: i32, %arg1: i32, %arg2: memref<2xi32, #tpu.memory_space<smem>>, %arg3: memref<1xi32, #tpu.memory_space<smem>>) -> (i32, i32, i32) {
    %c0_i32 = arith.constant 0 : i32
    %c0_i32_0 = arith.constant 0 : i32
    %c0_i32_1 = arith.constant 0 : i32
    %c0_i32_2 = arith.constant 0 : i32
    return %c0_i32, %c0_i32_0, %c0_i32_1 : i32, i32, i32
  }
  func.func @transform_4(%arg0: i32, %arg1: i32, %arg2: memref<2xi32, #tpu.memory_space<smem>>, %arg3: memref<1xi32, #tpu.memory_space<smem>>) -> (i32, i32, i32) {
    %c0_i32 = arith.constant 0 : i32
    %c0_i32_0 = arith.constant 0 : i32
    %c0_i32_1 = arith.constant 0 : i32
    %c0_i32_2 = arith.constant 0 : i32
    return %c0_i32, %c0_i32_0, %c0_i32_1 : i32, i32, i32
  }
  func.func @transform_5(%arg0: i32, %arg1: i32, %arg2: memref<2xi32, #tpu.memory_space<smem>>, %arg3: memref<1xi32, #tpu.memory_space<smem>>) -> (i32, i32, i32) {
    %c0_i32 = arith.constant 0 : i32
    %c0_i32_0 = arith.constant 0 : i32
    %c0_i32_1 = arith.constant 0 : i32
    %c0_i32_2 = arith.constant 0 : i32
    return %c0_i32, %c0_i32_0, %c0_i32_1 : i32, i32, i32
  }
  func.func @transform_6(%arg0: i32, %arg1: i32, %arg2: memref<2xi32, #tpu.memory_space<smem>>, %arg3: memref<1xi32, #tpu.memory_space<smem>>) -> (i32, i32) {
    %c0_i32 = arith.constant 0 : i32
    %c0_i32_0 = arith.constant 0 : i32
    return %arg0, %c0_i32 : i32, i32
  }
}

</mosaic_0001>

<llo_original>
// kernel: tpu_custom_call.1
$region0: #{tpu_custom_call.1}
  #allocation0 [shape = 'u32[]', space=smem, size = 0x4, offset = 0x4, fixed_abs, tag = 'smem constant byte address 0x4 - core index']
  #allocation1 [shape = 'u32[72,128]{1,0:T(1,128)}', space=vmem, size = 0x9000, scoped, tag = 'internal scratch']
  #allocation2 [shape = 's32[1]{0}', space=sflag, size = 0x4, scoped, tag = 'scoped memory for tpu_custom_call.1']
  #allocation3 [shape = 'u8[512]{0}', space=smem, size = 0x200, scoped, tag = 'prefetched SMEM operand 0']
  #allocation4 [shape = 's32[1]{0:T(128)S(6)}', space=smem, size = 0x200, scoped, tag = 'prefetched SMEM operand 1']
  %s0 = inlined_call_operand.hbm [shape: s32[2], index: 0, kind: input, shape index: {}]
  %s1 = inlined_call_operand.<no memory space> [shape: s32[1], index: 1, kind: input, shape index: {}]
  %s2 = inlined_call_operand.vmem [shape: s32[256,1], index: 2, kind: input, shape index: {}]
  %s3 = inlined_call_operand.vmem [shape: bf16[256,128], index: 3, kind: input, shape index: {}]
  %s4 = inlined_call_operand.vmem [shape: bf16[2,128,128], index: 4, kind: input, shape index: {}]
  %s5 = inlined_call_operand.vmem [shape: f32[2,1,128], index: 5, kind: input, shape index: {}]
  %s6 = inlined_call_operand.hbm [shape: bf16[2,128,128], index: 6, kind: input, shape index: {}]
  %s7 = inlined_call_operand.vmem [shape: f32[2,1,128], index: 7, kind: input, shape index: {}]
  %s8 = inlined_call_operand.hbm [shape: f32[256,128], index: 8, kind: output, shape index: {}]
  %s9 = sld [smem:[#allocation0]]
  $region69: #{tpu_custom_call.1} parent=0
    _
  %s11 = ssub.s32 1, %s9
  %s12 = scalar_select 0, %s11, %s9
  %s14 = sshll.u32 %s0, 4
  %s15 = int_to_ptr.hbm [resolvable:$true] %s14
  %17 = dma.hbm_to_smem %s15, 16, [#allocation3], [#allocation2]
  %18 = sst [smem:[#allocation4]] %s1
  %20 = dma.done [#allocation2], 16
  %21 = sfence
  $region1: #{tpu_custom_call.1} parent=0
    #allocation5 [shape = 'u8[65536]{0}', space=vmem, size = 0x10000, scoped, tag = 'input window, operand 6, single buffered']
    #allocation6 [shape = 's32[2]{0}', space=sflag, size = 0x8, scoped, tag = 'scoped memory for tpu_custom_call.1']
    #allocation7 [shape = 's32[2]{0}', space=sflag, size = 0x8, scoped, tag = 'scoped memory for tpu_custom_call.1']
    #allocation8 [shape = 'u8[131072]{0}', space=vmem, size = 0x20000, scoped, tag = 'output window, operand 0, single buffered']
    %22 = vsyncpa [#allocation6], 0
    %23 = vsyncpa [#allocation7], 0
    loop: start=0, step=1, limit=4
    $region2: #{tpu_custom_call.1} parent=1 // loop_pre_header
      _
    $region3: #{tpu_custom_call.1} parent=1 // loop_header
      %s25 = sphi 0, %s29
      %p26 = scmp.ge.s32.totalorder %s25, 4
      %s32 = sphi 0, %s44
      %s33 = sphi 0, %s40
      %s34 = sphi 0, %s32
      %s35 = sphi 0, %s33
      %s36 = sphi 0, %s34
      %s37 = sphi 0, %s35
      %s47 = sphi 0, %s49
      %s50 = sphi 0, %s47
      %s51 = sphi 0, %s50
      %s67 = sphi 0, %s51
      %s73 = sphi 0, %s75
      %s76 = sphi 0, %s73
      %s77 = sphi 0, %s76
      %s93 = sphi 0, %s77
      %s97 = sphi 0, %s97
      %s99 = sphi 0, %s97
      %s100 = sphi 0, %s99
      %s114 = sphi 0, %s100
      %s118 = sphi 0, %s118
      %s120 = sphi 0, %s118
      %s121 = sphi 0, %s120
      %s135 = sphi 0, %s121
      %s139 = sphi 0, %s139
      %s141 = sphi 0, %s139
      %s142 = sphi 0, %s141
      %s156 = sphi 0, %s142
      %s160 = sphi 0, %s160
      %s162 = sphi 0, %s160
      %s163 = sphi 0, %s162
      %s177 = sphi 0, %s163
      %s183 = sphi 0, %s185
      %s186 = sphi 0, %s183
      %s187 = sphi 0, %s186
      %s203 = sphi 0, %s187
    $region4: #{tpu_custom_call.1} parent=1 // loop_header_branch
      %28 = sbr.rel (%p26) target = $region8
    $region5: #{tpu_custom_call.1} parent=1 // loop_body
      %s30 = ssub.s32 %s25, 1
      %s31 = ssub.s32 %s25, 2
      %s38 = sadd.s32 1, %s33
      %p39 = scmp.ge.s32.totalorder %s38, 2
      %s40 = scalar_select %p39, 0, %s38
      %s41 = sadd.s32 1, %s32
      %s42 = scalar_select %p39, %s41, %s32
      %p43 = scmp.ge.s32.totalorder %s42, 1
      %s44 = scalar_select %p43, 0, %s42
      %s45 = ssub.s32 %s32, %s44
      %p46 = scmp.eq.s32.totalorder %s45, 0
      %s48 = sadd.s32 %s47, 1
      %s49 = scalar_select %p46, %s47, %s48
      %p52 = pneg %p46
      %p53 = scmp.eq.s32.totalorder %s25, 1
      %p54 = por %p52, %p53
      %p55 = scmp.ne.s32.totalorder %s47, %s50
      %p56 = scmp.eq.s32.totalorder %s25, 0
      %p57 = por %p55, %p56
      %p58 = scmp.ne.s32.totalorder %s47, %s50
      %p59 = scmp.eq.s32.totalorder %s30, 1
      %p60 = por %p58, %p59
      %p61 = scmp.ne.s32.totalorder %s50, %s51
      %p62 = scmp.eq.s32.totalorder %s30, 0
      %p63 = por %p61, %p62
      %p64 = scmp.ne.s32.totalorder %s50, %s51
      %p65 = scmp.eq.s32.totalorder %s31, 1
      %p66 = por %p64, %p65
      %p68 = scmp.ne.s32.totalorder %s51, %s67
      %p69 = scmp.eq.s32.totalorder %s31, 0
      %p70 = por %p68, %p69
      %s71 = ssub.s32 %s32, %s44
      %p72 = scmp.eq.s32.totalorder %s71, 0
      %s74 = sadd.s32 %s73, 1
      %s75 = scalar_select %p72, %s73, %s74
      %p78 = pneg %p72
      %p79 = scmp.eq.s32.totalorder %s25, 1
      %p80 = por %p78, %p79
      %p81 = scmp.ne.s32.totalorder %s73, %s76
      %p82 = scmp.eq.s32.totalorder %s25, 0
      %p83 = por %p81, %p82
      %p84 = scmp.ne.s32.totalorder %s73, %s76
      %p85 = scmp.eq.s32.totalorder %s30, 1
      %p86 = por %p84, %p85
      %p87 = scmp.ne.s32.totalorder %s76, %s77
      %p88 = scmp.eq.s32.totalorder %s30, 0
      %p89 = por %p87, %p88
      %p90 = scmp.ne.s32.totalorder %s76, %s77
      %p91 = scmp.eq.s32.totalorder %s31, 1
      %p92 = por %p90, %p91
      %p94 = scmp.ne.s32.totalorder %s77, %s93
      %p95 = scmp.eq.s32.totalorder %s31, 0
      %p96 = por %p94, %p95
      %s98 = sadd.s32 %s97, 1
      %p101 = scmp.eq.s32.totalorder %s25, 1
      %p102 = scmp.ne.s32.totalorder %s97, %s99
      %p103 = scmp.eq.s32.totalorder %s25, 0
      %p104 = por %p102, %p103
      %p105 = scmp.ne.s32.totalorder %s97, %s99
      %p106 = scmp.eq.s32.totalorder %s30, 1
      %p107 = por %p105, %p106
      %p108 = scmp.ne.s32.totalorder %s99, %s100
      %p109 = scmp.eq.s32.totalorder %s30, 0
      %p110 = por %p108, %p109
      %p111 = scmp.ne.s32.totalorder %s99, %s100
      %p112 = scmp.eq.s32.totalorder %s31, 1
      %p113 = por %p111, %p112
      %p115 = scmp.ne.s32.totalorder %s100, %s114
      %p116 = scmp.eq.s32.totalorder %s31, 0
      %p117 = por %p115, %p116
      %s119 = sadd.s32 %s118, 1
      %p122 = scmp.eq.s32.totalorder %s25, 1
      %p123 = scmp.ne.s32.totalorder %s118, %s120
      %p124 = scmp.eq.s32.totalorder %s25, 0
      %p125 = por %p123, %p124
      %p126 = scmp.ne.s32.totalorder %s118, %s120
      %p127 = scmp.eq.s32.totalorder %s30, 1
      %p128 = por %p126, %p127
      %p129 = scmp.ne.s32.totalorder %s120, %s121
      %p130 = scmp.eq.s32.totalorder %s30, 0
      %p131 = por %p129, %p130
      %p132 = scmp.ne.s32.totalorder %s120, %s121
      %p133 = scmp.eq.s32.totalorder %s31, 1
      %p134 = por %p132, %p133
      %p136 = scmp.ne.s32.totalorder %s121, %s135
      %p137 = scmp.eq.s32.totalorder %s31, 0
      %p138 = por %p136, %p137
      %s140 = sadd.s32 %s139, 1
      %p143 = scmp.eq.s32.totalorder %s25, 1
      %p144 = scmp.ne.s32.totalorder %s139, %s141
      %p145 = scmp.eq.s32.totalorder %s25, 0
      %p146 = por %p144, %p145
      %p147 = scmp.ne.s32.totalorder %s139, %s141
      %p148 = scmp.eq.s32.totalorder %s30, 1
      %p149 = por %p147, %p148
      %p150 = scmp.ne.s32.totalorder %s141, %s142
      %p151 = scmp.eq.s32.totalorder %s30, 0
      %p152 = por %p150, %p151
      %p153 = scmp.ne.s32.totalorder %s141, %s142
      %p154 = scmp.eq.s32.totalorder %s31, 1
      %p155 = por %p153, %p154
      %p157 = scmp.ne.s32.totalorder %s142, %s156
      %p158 = scmp.eq.s32.totalorder %s31, 0
      %p159 = por %p157, %p158
      %s161 = sadd.s32 %s160, 1
      %p164 = scmp.eq.s32.totalorder %s25, 1
      %p165 = scmp.ne.s32.totalorder %s160, %s162
      %p166 = scmp.eq.s32.totalorder %s25, 0
      %p167 = por %p165, %p166
      %p168 = scmp.ne.s32.totalorder %s160, %s162
      %p169 = scmp.eq.s32.totalorder %s30, 1
      %p170 = por %p168, %p169
      %p171 = scmp.ne.s32.totalorder %s162, %s163
      %p172 = scmp.eq.s32.totalorder %s30, 0
      %p173 = por %p171, %p172
      %p174 = scmp.ne.s32.totalorder %s162, %s163
      %p175 = scmp.eq.s32.totalorder %s31, 1
      %p176 = por %p174, %p175
      %p178 = scmp.ne.s32.totalorder %s163, %s177
      %p179 = scmp.eq.s32.totalorder %s31, 0
      %p180 = por %p178, %p179
      %s181 = ssub.s32 %s32, %s44
      %p182 = scmp.eq.s32.totalorder %s181, 0
      %s184 = sadd.s32 %s183, 1
      %s185 = scalar_select %p182, %s183, %s184
      %p188 = pneg %p182
      %p189 = scmp.eq.s32.totalorder %s25, 1
      %p190 = por %p188, %p189
      %p191 = scmp.ne.s32.totalorder %s183, %s186
      %p192 = scmp.eq.s32.totalorder %s25, 0
      %p193 = por %p191, %p192
      %p194 = scmp.ne.s32.totalorder %s183, %s186
      %p195 = scmp.eq.s32.totalorder %s30, 1
      %p196 = por %p194, %p195
      %p197 = scmp.ne.s32.totalorder %s186, %s187
      %p198 = scmp.eq.s32.totalorder %s30, 0
      %p199 = por %p197, %p198
      %p200 = scmp.ne.s32.totalorder %s186, %s187
      %p201 = scmp.eq.s32.totalorder %s31, 1
      %p202 = por %p200, %p201
      %p204 = scmp.ne.s32.totalorder %s187, %s203
      %p205 = scmp.eq.s32.totalorder %s31, 0
      %p206 = por %p204, %p205
      %p207 = scmp.le.s32.totalorder 1, %s25
      %p208 = scmp.lt.s32.totalorder %s25, 3
      %p209 = pnand %p207, %p208
      %p210 = pneg %p209
      // Predicated region
      $region9: #{tpu_custom_call.1} parent=5 // pred_check
        _
      $region10: #{tpu_custom_call.1} parent=5 // pred_check_branch
        %212 = sbr.rel (%p209) target = $region12
      $region11: #{tpu_custom_call.1} parent=5 // pred_region
        %s213 = ssub.s32 %s25, 1
        // Predicated region
        $region13: #{tpu_custom_call.1} parent=11 // pred_check
          %p214 = pneg %p63
        $region14: #{tpu_custom_call.1} parent=11 // pred_check_branch
          %216 = sbr.rel (%p214) target = $region16
        $region15: #{tpu_custom_call.1} parent=11 // pred_region
          %s217 = smul.u32 32, %s34
          %p218 = scmp.lt.s32.totalorder %s217, 31
          %s219 = scalar_select %p218, %s217, 31
          %s220 = smul.addr %s219, 8
          %s221 = scalar_lea.vmem %s2, %s220
          %s222 = smul.u32 32, %s34
        $region16: #{tpu_custom_call.1} parent=11 // pred_fallthru
          _
        // Predicated region
        $region17: #{tpu_custom_call.1} parent=11 // pred_check
          %p223 = pneg %p89
        $region18: #{tpu_custom_call.1} parent=11 // pred_check_branch
          %225 = sbr.rel (%p223) target = $region20
        $region19: #{tpu_custom_call.1} parent=11 // pred_region
          %s226 = smul.u32 32, %s34
          %p227 = scmp.lt.s32.totalorder %s226, 31
          %s228 = scalar_select %p227, %s226, 31
          %s229 = smul.addr %s228, 4
          %s230 = scalar_lea.vmem %s3, %s229
          %s231 = smul.u32 32, %s34
        $region20: #{tpu_custom_call.1} parent=11 // pred_fallthru
          _
        // Predicated region
        $region21: #{tpu_custom_call.1} parent=11 // pred_check
          %p232 = pneg %p110
        $region22: #{tpu_custom_call.1} parent=11 // pred_check_branch
          %234 = sbr.rel (%p232) target = $region24
        $region23: #{tpu_custom_call.1} parent=11 // pred_region
          _
        $region24: #{tpu_custom_call.1} parent=11 // pred_fallthru
          _
        // Predicated region
        $region25: #{tpu_custom_call.1} parent=11 // pred_check
          %p235 = pneg %p131
        $region26: #{tpu_custom_call.1} parent=11 // pred_check_branch
          %237 = sbr.rel (%p235) target = $region28
        $region27: #{tpu_custom_call.1} parent=11 // pred_region
          _
        $region28: #{tpu_custom_call.1} parent=11 // pred_fallthru
          _
        // Predicated region
        $region29: #{tpu_custom_call.1} parent=11 // pred_check
          %p238 = pneg %p152
        $region30: #{tpu_custom_call.1} parent=11 // pred_check_branch
          %240 = sbr.rel (%p238) target = $region32
        $region31: #{tpu_custom_call.1} parent=11 // pred_region
          %242 = vsyncadd [#allocation6], 0
          %s243 = sshll.u32 %s6, 4
          %s244 = int_to_ptr.hbm [resolvable:$true] %s243
          %s245 = sshll.u32 [#allocation5], 4
          %s246 = int_to_ptr.vmem [resolvable:$true] %s245
          %251 = dma.hbm_to_vmem [thread:$0]  %s244, 2048, %s246, [#allocation6], 64, 64, 4
        $region32: #{tpu_custom_call.1} parent=11 // pred_fallthru
          _
        // Predicated region
        $region33: #{tpu_custom_call.1} parent=11 // pred_check
          %p252 = pneg %p173
        $region34: #{tpu_custom_call.1} parent=11 // pred_check_branch
          %254 = sbr.rel (%p252) target = $region36
        $region35: #{tpu_custom_call.1} parent=11 // pred_region
          _
        $region36: #{tpu_custom_call.1} parent=11 // pred_fallthru
          _
      $region12: #{tpu_custom_call.1} parent=5 // pred_fallthru
        _
      %p255 = scmp.lt.s32.totalorder %s25, 2
      // Predicated region
      $region37: #{tpu_custom_call.1} parent=5 // pred_check
        %p256 = pneg %p255
      $region38: #{tpu_custom_call.1} parent=5 // pred_check_branch
        %258 = sbr.rel (%p256) target = $region40
      $region39: #{tpu_custom_call.1} parent=5 // pred_region
        _
      $region40: #{tpu_custom_call.1} parent=5 // pred_fallthru
        _
      %p259 = scmp.le.s32.totalorder 1, %s25
      %p260 = scmp.lt.s32.totalorder %s25, 3
      %p261 = pnand %p259, %p260
      %p262 = pneg %p261
      // Predicated region
      $region41: #{tpu_custom_call.1} parent=5 // pred_check
        _
      $region42: #{tpu_custom_call.1} parent=5 // pred_check_branch
        %264 = sbr.rel (%p261) target = $region44
      $region43: #{tpu_custom_call.1} parent=5 // pred_region
        %s265 = ssub.s32 %s25, 1
        // Predicated region
        $region45: #{tpu_custom_call.1} parent=43 // pred_check
          %p266 = pneg %p152
        $region46: #{tpu_custom_call.1} parent=43 // pred_check_branch
          %268 = sbr.rel (%p266) target = $region48
        $region47: #{tpu_custom_call.1} parent=43 // pred_region
          %270 = dma.done [#allocation6], 2048
        $region48: #{tpu_custom_call.1} parent=43 // pred_fallthru
          _
        %s271 = smul.u32 32, %s34
        %p272 = scmp.lt.s32.totalorder %s271, 31
        %s273 = scalar_select %p272, %s271, 31
        %s274 = smul.addr %s273, 8
        %s275 = scalar_lea.vmem %s2, %s274
        %p276 = pneg %p63
        %p277 = pneg %p60
        %s278 = smul.u32 32, %s34
        %p279 = scmp.lt.s32.totalorder %s278, 31
        %s280 = scalar_select %p279, %s278, 31
        %s281 = smul.addr %s280, 4
        %s282 = scalar_lea.vmem %s3, %s281
        %p283 = pneg %p89
        %p284 = pneg %p86
        %p285 = pneg %p110
        %p286 = pneg %p107
        %p287 = pneg %p131
        %p288 = pneg %p128
        %p289 = pneg %p152
        %p290 = pneg %p149
        %p291 = pneg %p173
        %p292 = pneg %p170
        %p293 = pneg %p199
        %p294 = pneg %p196
        %s295 = smul.u32 32, %s34
        %p296 = scmp.lt.s32.totalorder %s295, 31
        %s297 = scalar_select %p296, %s295, 31
        %s298 = smul.addr %s297, 8
        %s299 = scalar_lea.vmem %s2, %s298
        %s300 = smul.u32 32, %s34
        %s301 = smul.u32 32, %s34
        %p302 = scmp.lt.s32.totalorder %s301, 31
        %s303 = scalar_select %p302, %s301, 31
        %s304 = smul.addr %s303, 4
        %s305 = scalar_lea.vmem %s3, %s304
        %s306 = smul.u32 32, %s34
        %s307 = smul.u32 32, %s34
        %p308 = scmp.eq.s32.totalorder %s35, 0
        // Predicated region
        $region49: #{tpu_custom_call.1} parent=43 // pred_check
          %p309 = pneg %p308
        $region50: #{tpu_custom_call.1} parent=43 // pred_check_branch
          %311 = sbr.rel (%p309) target = $region52
        $region51: #{tpu_custom_call.1} parent=43 // pred_region
          %312 = vst [vmem:[#allocation8] sm:$0xff] 0.0
          %313 = vst [vmem:[#allocation8 + $0x8] sm:$0xff] 0.0
          %314 = vst [vmem:[#allocation8 + $0x10] sm:$0xff] 0.0
          %315 = vst [vmem:[#allocation8 + $0x18] sm:$0xff] 0.0
          %316 = vst [vmem:[#allocation8 + $0x20] sm:$0xff] 0.0
          %317 = vst [vmem:[#allocation8 + $0x28] sm:$0xff] 0.0
          %318 = vst [vmem:[#allocation8 + $0x30] sm:$0xff] 0.0
          %319 = vst [vmem:[#allocation8 + $0x38] sm:$0xff] 0.0
          %320 = vst [vmem:[#allocation8 + $0x40] sm:$0xff] 0.0
          %321 = vst [vmem:[#allocation8 + $0x48] sm:$0xff] 0.0
          %322 = vst [vmem:[#allocation8 + $0x50] sm:$0xff] 0.0
          %323 = vst [vmem:[#allocation8 + $0x58] sm:$0xff] 0.0
          %324 = vst [vmem:[#allocation8 + $0x60] sm:$0xff] 0.0
          %325 = vst [vmem:[#allocation8 + $0x68] sm:$0xff] 0.0
          %326 = vst [vmem:[#allocation8 + $0x70] sm:$0xff] 0.0
          %327 = vst [vmem:[#allocation8 + $0x78] sm:$0xff] 0.0
          %328 = vst [vmem:[#allocation8 + $0x80] sm:$0xff] 0.0
          %329 = vst [vmem:[#allocation8 + $0x88] sm:$0xff] 0.0
          %330 = vst [vmem:[#allocation8 + $0x90] sm:$0xff] 0.0
          %331 = vst [vmem:[#allocation8 + $0x98] sm:$0xff] 0.0
          %332 = vst [vmem:[#allocation8 + $0xa0] sm:$0xff] 0.0
          %333 = vst [vmem:[#allocation8 + $0xa8] sm:$0xff] 0.0
          %334 = vst [vmem:[#allocation8 + $0xb0] sm:$0xff] 0.0
          %335 = vst [vmem:[#allocation8 + $0xb8] sm:$0xff] 0.0
          %336 = vst [vmem:[#allocation8 + $0xc0] sm:$0xff] 0.0
          %337 = vst [vmem:[#allocation8 + $0xc8] sm:$0xff] 0.0
          %338 = vst [vmem:[#allocation8 + $0xd0] sm:$0xff] 0.0
          %339 = vst [vmem:[#allocation8 + $0xd8] sm:$0xff] 0.0
          %340 = vst [vmem:[#allocation8 + $0xe0] sm:$0xff] 0.0
          %341 = vst [vmem:[#allocation8 + $0xe8] sm:$0xff] 0.0
          %342 = vst [vmem:[#allocation8 + $0xf0] sm:$0xff] 0.0
          %343 = vst [vmem:[#allocation8 + $0xf8] sm:$0xff] 0.0
        $region52: #{tpu_custom_call.1} parent=43 // pred_fallthru
          _
        %s344 = smul.u32 %s34, 2
        %s345 = sadd.s32 %s344, %s35
        %s346 = sld [smem:[#allocation3 + %s345]]
        %s347 = sld [smem:[#allocation4 + %s34]]
        %p348 = scmp.lt.s32.totalorder %s35, %s347
        // Predicated region
        $region53: #{tpu_custom_call.1} parent=43 // pred_check
          %p349 = pneg %p348
        $region54: #{tpu_custom_call.1} parent=43 // pred_check_branch
          %351 = sbr.rel (%p349) target = $region56
        $region55: #{tpu_custom_call.1} parent=43 // pred_region
          %s352 = smul.u32 %s346, 16
          %s353 = smul.addr %s352, 4
          %s354 = scalar_lea.vmem %s4, %s353
          %v355 = vld [vmem:[%s354] sm:$0xf]
          %v356 = vld [vmem:[%s354 + $0x4] sm:$0xf]
          %v357 = vld [vmem:[%s354 + $0x8] sm:$0xf]
          %v358 = vld [vmem:[%s354 + $0xc] sm:$0xf]
          %v359 = vld [vmem:[%s354 + $0x10] sm:$0xf]
          %v360 = vld [vmem:[%s354 + $0x14] sm:$0xf]
          %v361 = vld [vmem:[%s354 + $0x18] sm:$0xf]
          %v362 = vld [vmem:[%s354 + $0x1c] sm:$0xf]
          %v363 = vld [vmem:[%s354 + $0x20] sm:$0xf]
          %v364 = vld [vmem:[%s354 + $0x24] sm:$0xf]
          %v365 = vld [vmem:[%s354 + $0x28] sm:$0xf]
          %v366 = vld [vmem:[%s354 + $0x2c] sm:$0xf]
          %v367 = vld [vmem:[%s354 + $0x30] sm:$0xf]
          %v368 = vld [vmem:[%s354 + $0x34] sm:$0xf]
          %v369 = vld [vmem:[%s354 + $0x38] sm:$0xf]
          %v370 = vld [vmem:[%s354 + $0x3c] sm:$0xf]
          %s371 = scalar_lea.vmem %s5, %s346
          %v372 = vld [vmem:[%s371] sm:$0x1]
          %s373 = smul.addr %s352, 4
          %s374 = scalar_lea.vmem [#allocation5], %s373
          %v375 = vld [vmem:[%s374] sm:$0xf]
          %v376 = vld [vmem:[%s374 + $0x4] sm:$0xf]
          %v377 = vld [vmem:[%s374 + $0x8] sm:$0xf]
          %v378 = vld [vmem:[%s374 + $0xc] sm:$0xf]
          %v379 = vld [vmem:[%s374 + $0x10] sm:$0xf]
          %v380 = vld [vmem:[%s374 + $0x14] sm:$0xf]
          %v381 = vld [vmem:[%s374 + $0x18] sm:$0xf]
          %v382 = vld [vmem:[%s374 + $0x1c] sm:$0xf]
          %v383 = vld [vmem:[%s374 + $0x20] sm:$0xf]
          %v384 = vld [vmem:[%s374 + $0x24] sm:$0xf]
          %v385 = vld [vmem:[%s374 + $0x28] sm:$0xf]
          %v386 = vld [vmem:[%s374 + $0x2c] sm:$0xf]
          %v387 = vld [vmem:[%s374 + $0x30] sm:$0xf]
          %v388 = vld [vmem:[%s374 + $0x34] sm:$0xf]
          %v389 = vld [vmem:[%s374 + $0x38] sm:$0xf]
          %v390 = vld [vmem:[%s374 + $0x3c] sm:$0xf]
          %s391 = scalar_lea.vmem %s7, %s346
          %v392 = vld [vmem:[%s391] sm:$0x1]
          %v393 = vld [vmem:[%s305] sm:$0xf]
          %v394 = vld [vmem:[%s305 + $0x4] sm:$0xf]
          %v395 = vld [vmem:[%s305 + $0x8] sm:$0xf]
          %v396 = vld [vmem:[%s305 + $0xc] sm:$0xf]
          %v397 = vld [vmem:[%s305 + $0x10] sm:$0xf]
          %v398 = vld [vmem:[%s305 + $0x14] sm:$0xf]
          %v399 = vld [vmem:[%s305 + $0x18] sm:$0xf]
          %v400 = vld [vmem:[%s305 + $0x1c] sm:$0xf]
          %v401 = vld [vmem:[%s305 + $0x20] sm:$0xf]
          %v402 = vld [vmem:[%s305 + $0x24] sm:$0xf]
          %v403 = vld [vmem:[%s305 + $0x28] sm:$0xf]
          %v404 = vld [vmem:[%s305 + $0x2c] sm:$0xf]
          %v405 = vld [vmem:[%s305 + $0x30] sm:$0xf]
          %v406 = vld [vmem:[%s305 + $0x34] sm:$0xf]
          %v407 = vld [vmem:[%s305 + $0x38] sm:$0xf]
          %v408 = vld [vmem:[%s305 + $0x3c] sm:$0xf]
          %v409 = vld [vmem:[%s305 + $0x40] sm:$0xf]
          %v410 = vld [vmem:[%s305 + $0x44] sm:$0xf]
          %v411 = vld [vmem:[%s305 + $0x48] sm:$0xf]
          %v412 = vld [vmem:[%s305 + $0x4c] sm:$0xf]
          %v413 = vld [vmem:[%s305 + $0x50] sm:$0xf]
          %v414 = vld [vmem:[%s305 + $0x54] sm:$0xf]
          %v415 = vld [vmem:[%s305 + $0x58] sm:$0xf]
          %v416 = vld [vmem:[%s305 + $0x5c] sm:$0xf]
          %v417 = vld [vmem:[%s305 + $0x60] sm:$0xf]
          %v418 = vld [vmem:[%s305 + $0x64] sm:$0xf]
          %v419 = vld [vmem:[%s305 + $0x68] sm:$0xf]
          %v420 = vld [vmem:[%s305 + $0x6c] sm:$0xf]
          %v421 = vld [vmem:[%s305 + $0x70] sm:$0xf]
          %v422 = vld [vmem:[%s305 + $0x74] sm:$0xf]
          %v423 = vld [vmem:[%s305 + $0x78] sm:$0xf]
          %v424 = vld [vmem:[%s305 + $0x7c] sm:$0xf]
          %v426 = vperm.slane %v372, 0
          %v460 = vunpack.c.l.b16 %v393
          %v461 = vunpack.c.l.b16 %v394
          %v462 = vunpack.c.l.b16 %v395
          %v463 = vunpack.c.l.b16 %v396
          %v464 = vunpack.c.l.b16 %v397
          %v465 = vunpack.c.l.b16 %v398
          %v466 = vunpack.c.l.b16 %v399
          %v467 = vunpack.c.l.b16 %v400
          %v468 = vunpack.c.l.b16 %v401
          %v469 = vunpack.c.l.b16 %v402
          %v470 = vunpack.c.l.b16 %v403
          %v471 = vunpack.c.l.b16 %v404
          %v472 = vunpack.c.l.b16 %v405
          %v473 = vunpack.c.l.b16 %v406
          %v474 = vunpack.c.l.b16 %v407
          %v475 = vunpack.c.l.b16 %v408
          %v476 = vunpack.c.l.b16 %v409
          %v477 = vunpack.c.l.b16 %v410
          %v478 = vunpack.c.l.b16 %v411
          %v479 = vunpack.c.l.b16 %v412
          %v480 = vunpack.c.l.b16 %v413
          %v481 = vunpack.c.l.b16 %v414
          %v482 = vunpack.c.l.b16 %v415
          %v483 = vunpack.c.l.b16 %v416
          %v484 = vunpack.c.l.b16 %v417
          %v485 = vunpack.c.l.b16 %v418
          %v486 = vunpack.c.l.b16 %v419
          %v487 = vunpack.c.l.b16 %v420
          %v488 = vunpack.c.l.b16 %v421
          %v489 = vunpack.c.l.b16 %v422
          %v490 = vunpack.c.l.b16 %v423
          %v491 = vunpack.c.l.b16 %v424
          %v492 = vpack.c.b16 %v461, %v460
          %v493 = vpack.c.b16 %v463, %v462
          %v494 = vpack.c.b16 %v465, %v464
          %v495 = vpack.c.b16 %v467, %v466
          %v496 = vpack.c.b16 %v469, %v468
          %v497 = vpack.c.b16 %v471, %v470
          %v498 = vpack.c.b16 %v473, %v472
          %v499 = vpack.c.b16 %v475, %v474
          %v500 = vpack.c.b16 %v477, %v476
          %v501 = vpack.c.b16 %v479, %v478
          %v502 = vpack.c.b16 %v481, %v480
          %v503 = vpack.c.b16 %v483, %v482
          %v504 = vpack.c.b16 %v485, %v484
          %v505 = vpack.c.b16 %v487, %v486
          %v506 = vpack.c.b16 %v489, %v488
          %v507 = vpack.c.b16 %v491, %v490
          %v540 = vunpack.c.l.b16 %v355
          %v541 = vunpack.c.l.b16 %v356
          %v542 = vunpack.c.l.b16 %v357
          %v543 = vunpack.c.l.b16 %v358
          %v544 = vunpack.c.l.b16 %v359
          %v545 = vunpack.c.l.b16 %v360
          %v546 = vunpack.c.l.b16 %v361
          %v547 = vunpack.c.l.b16 %v362
          %v548 = vunpack.c.l.b16 %v363
          %v549 = vunpack.c.l.b16 %v364
          %v550 = vunpack.c.l.b16 %v365
          %v551 = vunpack.c.l.b16 %v366
          %v552 = vunpack.c.l.b16 %v367
          %v553 = vunpack.c.l.b16 %v368
          %v554 = vunpack.c.l.b16 %v369
          %v555 = vunpack.c.l.b16 %v370
          %v556 = vpack.c.b16 %v541, %v540
          %v557 = vpack.c.b16 %v543, %v542
          %v558 = vpack.c.b16 %v545, %v544
          %v559 = vpack.c.b16 %v547, %v546
          %v560 = vpack.c.b16 %v549, %v548
          %v561 = vpack.c.b16 %v551, %v550
          %v562 = vpack.c.b16 %v553, %v552
          %v563 = vpack.c.b16 %v555, %v554
          %572 = vmatpush.bf16.msra.mxu0 %v563
          %573 = vmatpush.bf16.msra.mxu0 %v562
          %574 = vmatpush.bf16.msra.mxu0 %v561
          %575 = vmatpush.bf16.msra.mxu0 %v560
          %576 = vmatpush.bf16.msra.mxu0 %v559
          %577 = vmatpush.bf16.msra.mxu0 %v558
          %578 = vmatpush.bf16.msra.mxu0 %v557
          %579 = vmatpush.bf16.msra.mxu0 %v556
          %580 = vmatmul.bf16.gmra.mxu0 %v492
          %v581 = vpop.f32.mrf.mxu0
          %v582 = vadd.f32 %v426, %v581
          %v583 = vpop.f32.mrf.mxu0
          %v584 = vadd.f32 %v426, %v583
          %585 = vmatmul.bf16.gmra.mxu0 %v493
          %v586 = vpop.f32.mrf.mxu0
          %v587 = vadd.f32 %v426, %v586
          %v588 = vpop.f32.mrf.mxu0
          %v589 = vadd.f32 %v426, %v588
          %590 = vmatmul.bf16.gmra.mxu0 %v494
          %v591 = vpop.f32.mrf.mxu0
          %v592 = vadd.f32 %v426, %v591
          %v593 = vpop.f32.mrf.mxu0
          %v594 = vadd.f32 %v426, %v593
          %595 = vmatmul.bf16.gmra.mxu0 %v495
          %v596 = vpop.f32.mrf.mxu0
          %v597 = vadd.f32 %v426, %v596
          %v598 = vpop.f32.mrf.mxu0
          %v599 = vadd.f32 %v426, %v598
          %600 = vmatmul.bf16.gmra.mxu0 %v496
          %v601 = vpop.f32.mrf.mxu0
          %v602 = vadd.f32 %v426, %v601
          %v603 = vpop.f32.mrf.mxu0
          %v604 = vadd.f32 %v426, %v603
          %605 = vmatmul.bf16.gmra.mxu0 %v497
          %v606 = vpop.f32.mrf.mxu0
          %v607 = vadd.f32 %v426, %v606
          %v608 = vpop.f32.mrf.mxu0
          %v609 = vadd.f32 %v426, %v608
          %610 = vmatmul.bf16.gmra.mxu0 %v498
          %v611 = vpop.f32.mrf.mxu0
          %v612 = vadd.f32 %v426, %v611
          %v613 = vpop.f32.mrf.mxu0
          %v614 = vadd.f32 %v426, %v613
          %615 = vmatmul.bf16.gmra.mxu0 %v499
          %v616 = vpop.f32.mrf.mxu0
          %v617 = vadd.f32 %v426, %v616
          %v618 = vpop.f32.mrf.mxu0
          %v619 = vadd.f32 %v426, %v618
          %620 = vmatmul.bf16.gmra.mxu0 %v500
          %v621 = vpop.f32.mrf.mxu0
          %v622 = vadd.f32 %v426, %v621
          %v623 = vpop.f32.mrf.mxu0
          %v624 = vadd.f32 %v426, %v623
          %625 = vmatmul.bf16.gmra.mxu0 %v501
          %v626 = vpop.f32.mrf.mxu0
          %v627 = vadd.f32 %v426, %v626
          %v628 = vpop.f32.mrf.mxu0
          %v629 = vadd.f32 %v426, %v628
          %630 = vmatmul.bf16.gmra.mxu0 %v502
          %v631 = vpop.f32.mrf.mxu0
          %v632 = vadd.f32 %v426, %v631
          %v633 = vpop.f32.mrf.mxu0
          %v634 = vadd.f32 %v426, %v633
          %635 = vmatmul.bf16.gmra.mxu0 %v503
          %v636 = vpop.f32.mrf.mxu0
          %v637 = vadd.f32 %v426, %v636
          %v638 = vpop.f32.mrf.mxu0
          %v639 = vadd.f32 %v426, %v638
          %640 = vmatmul.bf16.gmra.mxu0 %v504
          %v641 = vpop.f32.mrf.mxu0
          %v642 = vadd.f32 %v426, %v641
          %v643 = vpop.f32.mrf.mxu0
          %v644 = vadd.f32 %v426, %v643
          %645 = vmatmul.bf16.gmra.mxu0 %v505
          %v646 = vpop.f32.mrf.mxu0
          %v647 = vadd.f32 %v426, %v646
          %v648 = vpop.f32.mrf.mxu0
          %v649 = vadd.f32 %v426, %v648
          %650 = vmatmul.bf16.gmra.mxu0 %v506
          %v651 = vpop.f32.mrf.mxu0
          %v652 = vadd.f32 %v426, %v651
          %v653 = vpop.f32.mrf.mxu0
          %v654 = vadd.f32 %v426, %v653
          %655 = vmatmul.bf16.gmra.mxu0 %v507
          %v656 = vpop.f32.mrf.mxu0
          %v657 = vadd.f32 %v426, %v656
          %v658 = vpop.f32.mrf.mxu0
          %v659 = vadd.f32 %v426, %v658
          %660 = vdwg.mxu0
          %v661 = vmax.f32 %v582, 0.0
          %v662 = vmax.f32 %v584, 0.0
          %v663 = vmax.f32 %v587, 0.0
          %v664 = vmax.f32 %v589, 0.0
          %v665 = vmax.f32 %v592, 0.0
          %v666 = vmax.f32 %v594, 0.0
          %v667 = vmax.f32 %v597, 0.0
          %v668 = vmax.f32 %v599, 0.0
          %v669 = vmax.f32 %v602, 0.0
          %v670 = vmax.f32 %v604, 0.0
          %v671 = vmax.f32 %v607, 0.0
          %v672 = vmax.f32 %v609, 0.0
          %v673 = vmax.f32 %v612, 0.0
          %v674 = vmax.f32 %v614, 0.0
          %v675 = vmax.f32 %v617, 0.0
          %v676 = vmax.f32 %v619, 0.0
          %v677 = vmax.f32 %v622, 0.0
          %v678 = vmax.f32 %v624, 0.0
          %v679 = vmax.f32 %v627, 0.0
          %v680 = vmax.f32 %v629, 0.0
          %v681 = vmax.f32 %v632, 0.0
          %v682 = vmax.f32 %v634, 0.0
          %v683 = vmax.f32 %v637, 0.0
          %v684 = vmax.f32 %v639, 0.0
          %v685 = vmax.f32 %v642, 0.0
          %v686 = vmax.f32 %v644, 0.0
          %v687 = vmax.f32 %v647, 0.0
          %v688 = vmax.f32 %v649, 0.0
          %v689 = vmax.f32 %v652, 0.0
          %v690 = vmax.f32 %v654, 0.0
          %v691 = vmax.f32 %v657, 0.0
          %v692 = vmax.f32 %v659, 0.0
          %v693 = vpack.c.bf16 %v662, %v661
          %v694 = vpack.c.bf16 %v664, %v663
          %v695 = vpack.c.bf16 %v666, %v665
          %v696 = vpack.c.bf16 %v668, %v667
          %v697 = vpack.c.bf16 %v670, %v669
          %v698 = vpack.c.bf16 %v672, %v671
          %v699 = vpack.c.bf16 %v674, %v673
          %v700 = vpack.c.bf16 %v676, %v675
          %v701 = vpack.c.bf16 %v678, %v677
          %v702 = vpack.c.bf16 %v680, %v679
          %v703 = vpack.c.bf16 %v682, %v681
          %v704 = vpack.c.bf16 %v684, %v683
          %v705 = vpack.c.bf16 %v686, %v685
          %v706 = vpack.c.bf16 %v688, %v687
          %v707 = vpack.c.bf16 %v690, %v689
          %v708 = vpack.c.bf16 %v692, %v691
          %v710 = vperm.slane %v392, 0
          %v728 = vunpack.c.l.b16 %v375
          %v729 = vunpack.c.l.b16 %v376
          %v730 = vunpack.c.l.b16 %v377
          %v731 = vunpack.c.l.b16 %v378
          %v732 = vunpack.c.l.b16 %v379
          %v733 = vunpack.c.l.b16 %v380
          %v734 = vunpack.c.l.b16 %v381
          %v735 = vunpack.c.l.b16 %v382
          %v736 = vunpack.c.l.b16 %v383
          %v737 = vunpack.c.l.b16 %v384
          %v738 = vunpack.c.l.b16 %v385
          %v739 = vunpack.c.l.b16 %v386
          %v740 = vunpack.c.l.b16 %v387
          %v741 = vunpack.c.l.b16 %v388
          %v742 = vunpack.c.l.b16 %v389
          %v743 = vunpack.c.l.b16 %v390
          %v744 = vpack.c.b16 %v729, %v728
          %v745 = vpack.c.b16 %v731, %v730
          %v746 = vpack.c.b16 %v733, %v732
          %v747 = vpack.c.b16 %v735, %v734
          %v748 = vpack.c.b16 %v737, %v736
          %v749 = vpack.c.b16 %v739, %v738
          %v750 = vpack.c.b16 %v741, %v740
          %v751 = vpack.c.b16 %v743, %v742
          %760 = vmatpush.bf16.msra.mxu0 %v751
          %761 = vmatpush.bf16.msra.mxu0 %v750
          %762 = vmatpush.bf16.msra.mxu0 %v749
          %763 = vmatpush.bf16.msra.mxu0 %v748
          %764 = vmatpush.bf16.msra.mxu0 %v747
          %765 = vmatpush.bf16.msra.mxu0 %v746
          %766 = vmatpush.bf16.msra.mxu0 %v745
          %767 = vmatpush.bf16.msra.mxu0 %v744
          %768 = vmatmul.bf16.gmra.mxu0 %v693
          %v769 = vpop.f32.mrf.mxu0
          %v770 = vadd.f32 %v710, %v769
          %v771 = vpop.f32.mrf.mxu0
          %v772 = vadd.f32 %v710, %v771
          %773 = vmatmul.bf16.gmra.mxu0 %v694
          %v774 = vpop.f32.mrf.mxu0
          %v775 = vadd.f32 %v710, %v774
          %v776 = vpop.f32.mrf.mxu0
          %v777 = vadd.f32 %v710, %v776
          %778 = vmatmul.bf16.gmra.mxu0 %v695
          %v779 = vpop.f32.mrf.mxu0
          %v780 = vadd.f32 %v710, %v779
          %v781 = vpop.f32.mrf.mxu0
          %v782 = vadd.f32 %v710, %v781
          %783 = vmatmul.bf16.gmra.mxu0 %v696
          %v784 = vpop.f32.mrf.mxu0
          %v785 = vadd.f32 %v710, %v784
          %v786 = vpop.f32.mrf.mxu0
          %v787 = vadd.f32 %v710, %v786
          %788 = vmatmul.bf16.gmra.mxu0 %v697
          %v789 = vpop.f32.mrf.mxu0
          %v790 = vadd.f32 %v710, %v789
          %v791 = vpop.f32.mrf.mxu0
          %v792 = vadd.f32 %v710, %v791
          %793 = vmatmul.bf16.gmra.mxu0 %v698
          %v794 = vpop.f32.mrf.mxu0
          %v795 = vadd.f32 %v710, %v794
          %v796 = vpop.f32.mrf.mxu0
          %v797 = vadd.f32 %v710, %v796
          %798 = vmatmul.bf16.gmra.mxu0 %v699
          %v799 = vpop.f32.mrf.mxu0
          %v800 = vadd.f32 %v710, %v799
          %v801 = vpop.f32.mrf.mxu0
          %v802 = vadd.f32 %v710, %v801
          %803 = vmatmul.bf16.gmra.mxu0 %v700
          %v804 = vpop.f32.mrf.mxu0
          %v805 = vadd.f32 %v710, %v804
          %v806 = vpop.f32.mrf.mxu0
          %v807 = vadd.f32 %v710, %v806
          %808 = vmatmul.bf16.gmra.mxu0 %v701
          %v809 = vpop.f32.mrf.mxu0
          %v810 = vadd.f32 %v710, %v809
          %v811 = vpop.f32.mrf.mxu0
          %v812 = vadd.f32 %v710, %v811
          %813 = vmatmul.bf16.gmra.mxu0 %v702
          %v814 = vpop.f32.mrf.mxu0
          %v815 = vadd.f32 %v710, %v814
          %v816 = vpop.f32.mrf.mxu0
          %v817 = vadd.f32 %v710, %v816
          %818 = vmatmul.bf16.gmra.mxu0 %v703
          %v819 = vpop.f32.mrf.mxu0
          %v820 = vadd.f32 %v710, %v819
          %v821 = vpop.f32.mrf.mxu0
          %v822 = vadd.f32 %v710, %v821
          %823 = vmatmul.bf16.gmra.mxu0 %v704
          %v824 = vpop.f32.mrf.mxu0
          %v825 = vadd.f32 %v710, %v824
          %v826 = vpop.f32.mrf.mxu0
          %v827 = vadd.f32 %v710, %v826
          %828 = vmatmul.bf16.gmra.mxu0 %v705
          %v829 = vpop.f32.mrf.mxu0
          %v830 = vadd.f32 %v710, %v829
          %v831 = vpop.f32.mrf.mxu0
          %v832 = vadd.f32 %v710, %v831
          %833 = vmatmul.bf16.gmra.mxu0 %v706
          %v834 = vpop.f32.mrf.mxu0
          %v835 = vadd.f32 %v710, %v834
          %v836 = vpop.f32.mrf.mxu0
          %v837 = vadd.f32 %v710, %v836
          %838 = vmatmul.bf16.gmra.mxu0 %v707
          %v839 = vpop.f32.mrf.mxu0
          %v840 = vadd.f32 %v710, %v839
          %v841 = vpop.f32.mrf.mxu0
          %v842 = vadd.f32 %v710, %v841
          %843 = vmatmul.bf16.gmra.mxu0 %v708
          %v844 = vpop.f32.mrf.mxu0
          %v845 = vadd.f32 %v710, %v844
          %v846 = vpop.f32.mrf.mxu0
          %v847 = vadd.f32 %v710, %v846
          %848 = vdwg.mxu0
          %v849 = vld [vmem:[%s299] sm:$0xff]
          %v850 = vld [vmem:[%s299 + $0x8] sm:$0xff]
          %v851 = vld [vmem:[%s299 + $0x10] sm:$0xff]
          %v852 = vld [vmem:[%s299 + $0x18] sm:$0xff]
          %v853 = vld [vmem:[%s299 + $0x20] sm:$0xff]
          %v854 = vld [vmem:[%s299 + $0x28] sm:$0xff]
          %v855 = vld [vmem:[%s299 + $0x30] sm:$0xff]
          %v856 = vld [vmem:[%s299 + $0x38] sm:$0xff]
          %v857 = vld [vmem:[%s299 + $0x40] sm:$0xff]
          %v858 = vld [vmem:[%s299 + $0x48] sm:$0xff]
          %v859 = vld [vmem:[%s299 + $0x50] sm:$0xff]
          %v860 = vld [vmem:[%s299 + $0x58] sm:$0xff]
          %v861 = vld [vmem:[%s299 + $0x60] sm:$0xff]
          %v862 = vld [vmem:[%s299 + $0x68] sm:$0xff]
          %v863 = vld [vmem:[%s299 + $0x70] sm:$0xff]
          %v864 = vld [vmem:[%s299 + $0x78] sm:$0xff]
          %v865 = vld [vmem:[%s299 + $0x80] sm:$0xff]
          %v866 = vld [vmem:[%s299 + $0x88] sm:$0xff]
          %v867 = vld [vmem:[%s299 + $0x90] sm:$0xff]
          %v868 = vld [vmem:[%s299 + $0x98] sm:$0xff]
          %v869 = vld [vmem:[%s299 + $0xa0] sm:$0xff]
          %v870 = vld [vmem:[%s299 + $0xa8] sm:$0xff]
          %v871 = vld [vmem:[%s299 + $0xb0] sm:$0xff]
          %v872 = vld [vmem:[%s299 + $0xb8] sm:$0xff]
          %v873 = vld [vmem:[%s299 + $0xc0] sm:$0xff]
          %v874 = vld [vmem:[%s299 + $0xc8] sm:$0xff]
          %v875 = vld [vmem:[%s299 + $0xd0] sm:$0xff]
          %v876 = vld [vmem:[%s299 + $0xd8] sm:$0xff]
          %v877 = vld [vmem:[%s299 + $0xe0] sm:$0xff]
          %v878 = vld [vmem:[%s299 + $0xe8] sm:$0xff]
          %v879 = vld [vmem:[%s299 + $0xf0] sm:$0xff]
          %v880 = vld [vmem:[%s299 + $0xf8] sm:$0xff]
          %v881 = vstv %s346
          %vm882 = vcmp.eq.s32.totalorder %v849, %v881
          %vm883 = vcmp.eq.s32.totalorder %v850, %v881
          %vm884 = vcmp.eq.s32.totalorder %v851, %v881
          %vm885 = vcmp.eq.s32.totalorder %v852, %v881
          %vm886 = vcmp.eq.s32.totalorder %v853, %v881
          %vm887 = vcmp.eq.s32.totalorder %v854, %v881
          %vm888 = vcmp.eq.s32.totalorder %v855, %v881
          %vm889 = vcmp.eq.s32.totalorder %v856, %v881
          %vm890 = vcmp.eq.s32.totalorder %v857, %v881
          %vm891 = vcmp.eq.s32.totalorder %v858, %v881
          %vm892 = vcmp.eq.s32.totalorder %v859, %v881
          %vm893 = vcmp.eq.s32.totalorder %v860, %v881
          %vm894 = vcmp.eq.s32.totalorder %v861, %v881
          %vm895 = vcmp.eq.s32.totalorder %v862, %v881
          %vm896 = vcmp.eq.s32.totalorder %v863, %v881
          %vm897 = vcmp.eq.s32.totalorder %v864, %v881
          %vm898 = vcmp.eq.s32.totalorder %v865, %v881
          %vm899 = vcmp.eq.s32.totalorder %v866, %v881
          %vm900 = vcmp.eq.s32.totalorder %v867, %v881
          %vm901 = vcmp.eq.s32.totalorder %v868, %v881
          %vm902 = vcmp.eq.s32.totalorder %v869, %v881
          %vm903 = vcmp.eq.s32.totalorder %v870, %v881
          %vm904 = vcmp.eq.s32.totalorder %v871, %v881
          %vm905 = vcmp.eq.s32.totalorder %v872, %v881
          %vm906 = vcmp.eq.s32.totalorder %v873, %v881
          %vm907 = vcmp.eq.s32.totalorder %v874, %v881
          %vm908 = vcmp.eq.s32.totalorder %v875, %v881
          %vm909 = vcmp.eq.s32.totalorder %v876, %v881
          %vm910 = vcmp.eq.s32.totalorder %v877, %v881
          %vm911 = vcmp.eq.s32.totalorder %v878, %v881
          %vm912 = vcmp.eq.s32.totalorder %v879, %v881
          %vm913 = vcmp.eq.s32.totalorder %v880, %v881
          %v914 = vld [vmem:[#allocation8] sm:$0xff]
          %v915 = vld [vmem:[#allocation8 + $0x8] sm:$0xff]
          %v916 = vld [vmem:[#allocation8 + $0x10] sm:$0xff]
          %v917 = vld [vmem:[#allocation8 + $0x18] sm:$0xff]
          %v918 = vld [vmem:[#allocation8 + $0x20] sm:$0xff]
          %v919 = vld [vmem:[#allocation8 + $0x28] sm:$0xff]
          %v920 = vld [vmem:[#allocation8 + $0x30] sm:$0xff]
          %v921 = vld [vmem:[#allocation8 + $0x38] sm:$0xff]
          %v922 = vld [vmem:[#allocation8 + $0x40] sm:$0xff]
          %v923 = vld [vmem:[#allocation8 + $0x48] sm:$0xff]
          %v924 = vld [vmem:[#allocation8 + $0x50] sm:$0xff]
          %v925 = vld [vmem:[#allocation8 + $0x58] sm:$0xff]
          %v926 = vld [vmem:[#allocation8 + $0x60] sm:$0xff]
          %v927 = vld [vmem:[#allocation8 + $0x68] sm:$0xff]
          %v928 = vld [vmem:[#allocation8 + $0x70] sm:$0xff]
          %v929 = vld [vmem:[#allocation8 + $0x78] sm:$0xff]
          %v930 = vld [vmem:[#allocation8 + $0x80] sm:$0xff]
          %v931 = vld [vmem:[#allocation8 + $0x88] sm:$0xff]
          %v932 = vld [vmem:[#allocation8 + $0x90] sm:$0xff]
          %v933 = vld [vmem:[#allocation8 + $0x98] sm:$0xff]
          %v934 = vld [vmem:[#allocation8 + $0xa0] sm:$0xff]
          %v935 = vld [vmem:[#allocation8 + $0xa8] sm:$0xff]
          %v936 = vld [vmem:[#allocation8 + $0xb0] sm:$0xff]
          %v937 = vld [vmem:[#allocation8 + $0xb8] sm:$0xff]
          %v938 = vld [vmem:[#allocation8 + $0xc0] sm:$0xff]
          %v939 = vld [vmem:[#allocation8 + $0xc8] sm:$0xff]
          %v940 = vld [vmem:[#allocation8 + $0xd0] sm:$0xff]
          %v941 = vld [vmem:[#allocation8 + $0xd8] sm:$0xff]
          %v942 = vld [vmem:[#allocation8 + $0xe0] sm:$0xff]
          %v943 = vld [vmem:[#allocation8 + $0xe8] sm:$0xff]
          %v944 = vld [vmem:[#allocation8 + $0xf0] sm:$0xff]
          %v945 = vld [vmem:[#allocation8 + $0xf8] sm:$0xff]
          %v946 = vsel %vm882, 1, 0
          %v947 = vsel %vm883, 1, 0
          %v948 = vsel %vm884, 1, 0
          %v949 = vsel %vm885, 1, 0
          %v950 = vsel %vm886, 1, 0
          %v951 = vsel %vm887, 1, 0
          %v952 = vsel %vm888, 1, 0
          %v953 = vsel %vm889, 1, 0
          %v954 = vsel %vm890, 1, 0
          %v955 = vsel %vm891, 1, 0
          %v956 = vsel %vm892, 1, 0
          %v957 = vsel %vm893, 1, 0
          %v958 = vsel %vm894, 1, 0
          %v959 = vsel %vm895, 1, 0
          %v960 = vsel %vm896, 1, 0
          %v961 = vsel %vm897, 1, 0
          %v962 = vsel %vm898, 1, 0
          %v963 = vsel %vm899, 1, 0
          %v964 = vsel %vm900, 1, 0
          %v965 = vsel %vm901, 1, 0
          %v966 = vsel %vm902, 1, 0
          %v967 = vsel %vm903, 1, 0
          %v968 = vsel %vm904, 1, 0
          %v969 = vsel %vm905, 1, 0
          %v970 = vsel %vm906, 1, 0
          %v971 = vsel %vm907, 1, 0
          %v972 = vsel %vm908, 1, 0
          %v973 = vsel %vm909, 1, 0
          %v974 = vsel %vm910, 1, 0
          %v975 = vsel %vm911, 1, 0
          %v976 = vsel %vm912, 1, 0
          %v977 = vsel %vm913, 1, 0
          %978 = vset.pattern.permute.xlu0 0
          %979 = vperm.xlu0 %978, %v946
          %v980 = vpop.permute.xlu0 %979
          %981 = vset.pattern.permute.xlu0 0
          %982 = vperm.xlu0 %981, %v947
          %v983 = vpop.permute.xlu0 %982
          %984 = vset.pattern.permute.xlu0 0
          %985 = vperm.xlu0 %984, %v948
          %v986 = vpop.permute.xlu0 %985
          %987 = vset.pattern.permute.xlu0 0
          %988 = vperm.xlu0 %987, %v949
          %v989 = vpop.permute.xlu0 %988
          %990 = vset.pattern.permute.xlu0 0
          %991 = vperm.xlu0 %990, %v950
          %v992 = vpop.permute.xlu0 %991
          %993 = vset.pattern.permute.xlu0 0
          %994 = vperm.xlu0 %993, %v951
          %v995 = vpop.permute.xlu0 %994
          %996 = vset.pattern.permute.xlu0 0
          %997 = vperm.xlu0 %996, %v952
          %v998 = vpop.permute.xlu0 %997
          %999 = vset.pattern.permute.xlu0 0
          %1000 = vperm.xlu0 %999, %v953
          %v1001 = vpop.permute.xlu0 %1000
          %1002 = vset.pattern.permute.xlu0 0
          %1003 = vperm.xlu0 %1002, %v954
          %v1004 = vpop.permute.xlu0 %1003
          %1005 = vset.pattern.permute.xlu0 0
          %1006 = vperm.xlu0 %1005, %v955
          %v1007 = vpop.permute.xlu0 %1006
          %1008 = vset.pattern.permute.xlu0 0
          %1009 = vperm.xlu0 %1008, %v956
          %v1010 = vpop.permute.xlu0 %1009
          %1011 = vset.pattern.permute.xlu0 0
          %1012 = vperm.xlu0 %1011, %v957
          %v1013 = vpop.permute.xlu0 %1012
          %1014 = vset.pattern.permute.xlu0 0
          %1015 = vperm.xlu0 %1014, %v958
          %v1016 = vpop.permute.xlu0 %1015
          %1017 = vset.pattern.permute.xlu0 0
          %1018 = vperm.xlu0 %1017, %v959
          %v1019 = vpop.permute.xlu0 %1018
          %1020 = vset.pattern.permute.xlu0 0
          %1021 = vperm.xlu0 %1020, %v960
          %v1022 = vpop.permute.xlu0 %1021
          %1023 = vset.pattern.permute.xlu0 0
          %1024 = vperm.xlu0 %1023, %v961
          %v1025 = vpop.permute.xlu0 %1024
          %1026 = vset.pattern.permute.xlu0 0
          %1027 = vperm.xlu0 %1026, %v962
          %v1028 = vpop.permute.xlu0 %1027
          %1029 = vset.pattern.permute.xlu0 0
          %1030 = vperm.xlu0 %1029, %v963
          %v1031 = vpop.permute.xlu0 %1030
          %1032 = vset.pattern.permute.xlu0 0
          %1033 = vperm.xlu0 %1032, %v964
          %v1034 = vpop.permute.xlu0 %1033
          %1035 = vset.pattern.permute.xlu0 0
          %1036 = vperm.xlu0 %1035, %v965
          %v1037 = vpop.permute.xlu0 %1036
          %1038 = vset.pattern.permute.xlu0 0
          %1039 = vperm.xlu0 %1038, %v966
          %v1040 = vpop.permute.xlu0 %1039
          %1041 = vset.pattern.permute.xlu0 0
          %1042 = vperm.xlu0 %1041, %v967
          %v1043 = vpop.permute.xlu0 %1042
          %1044 = vset.pattern.permute.xlu0 0
          %1045 = vperm.xlu0 %1044, %v968
          %v1046 = vpop.permute.xlu0 %1045
          %1047 = vset.pattern.permute.xlu0 0
          %1048 = vperm.xlu0 %1047, %v969
          %v1049 = vpop.permute.xlu0 %1048
          %1050 = vset.pattern.permute.xlu0 0
          %1051 = vperm.xlu0 %1050, %v970
          %v1052 = vpop.permute.xlu0 %1051
          %1053 = vset.pattern.permute.xlu0 0
          %1054 = vperm.xlu0 %1053, %v971
          %v1055 = vpop.permute.xlu0 %1054
          %1056 = vset.pattern.permute.xlu0 0
          %1057 = vperm.xlu0 %1056, %v972
          %v1058 = vpop.permute.xlu0 %1057
          %1059 = vset.pattern.permute.xlu0 0
          %1060 = vperm.xlu0 %1059, %v973
          %v1061 = vpop.permute.xlu0 %1060
          %1062 = vset.pattern.permute.xlu0 0
          %1063 = vperm.xlu0 %1062, %v974
          %v1064 = vpop.permute.xlu0 %1063
          %1065 = vset.pattern.permute.xlu0 0
          %1066 = vperm.xlu0 %1065, %v975
          %v1067 = vpop.permute.xlu0 %1066
          %1068 = vset.pattern.permute.xlu0 0
          %1069 = vperm.xlu0 %1068, %v976
          %v1070 = vpop.permute.xlu0 %1069
          %1071 = vset.pattern.permute.xlu0 0
          %1072 = vperm.xlu0 %1071, %v977
          %v1073 = vpop.permute.xlu0 %1072
          %vm1074 = vcmp.eq.s32.totalorder %v980, 1
          %vm1075 = vcmp.eq.s32.totalorder %v983, 1
          %vm1076 = vcmp.eq.s32.totalorder %v986, 1
          %vm1077 = vcmp.eq.s32.totalorder %v989, 1
          %vm1078 = vcmp.eq.s32.totalorder %v992, 1
          %vm1079 = vcmp.eq.s32.totalorder %v995, 1
          %vm1080 = vcmp.eq.s32.totalorder %v998, 1
          %vm1081 = vcmp.eq.s32.totalorder %v1001, 1
          %vm1082 = vcmp.eq.s32.totalorder %v1004, 1
          %vm1083 = vcmp.eq.s32.totalorder %v1007, 1
          %vm1084 = vcmp.eq.s32.totalorder %v1010, 1
          %vm1085 = vcmp.eq.s32.totalorder %v1013, 1
          %vm1086 = vcmp.eq.s32.totalorder %v1016, 1
          %vm1087 = vcmp.eq.s32.totalorder %v1019, 1
          %vm1088 = vcmp.eq.s32.totalorder %v1022, 1
          %vm1089 = vcmp.eq.s32.totalorder %v1025, 1
          %vm1090 = vcmp.eq.s32.totalorder %v1028, 1
          %vm1091 = vcmp.eq.s32.totalorder %v1031, 1
          %vm1092 = vcmp.eq.s32.totalorder %v1034, 1
          %vm1093 = vcmp.eq.s32.totalorder %v1037, 1
          %vm1094 = vcmp.eq.s32.totalorder %v1040, 1
          %vm1095 = vcmp.eq.s32.totalorder %v1043, 1
          %vm1096 = vcmp.eq.s32.totalorder %v1046, 1
          %vm1097 = vcmp.eq.s32.totalorder %v1049, 1
          %vm1098 = vcmp.eq.s32.totalorder %v1052, 1
          %vm1099 = vcmp.eq.s32.totalorder %v1055, 1
          %vm1100 = vcmp.eq.s32.totalorder %v1058, 1
          %vm1101 = vcmp.eq.s32.totalorder %v1061, 1
          %vm1102 = vcmp.eq.s32.totalorder %v1064, 1
          %vm1103 = vcmp.eq.s32.totalorder %v1067, 1
          %vm1104 = vcmp.eq.s32.totalorder %v1070, 1
          %vm1105 = vcmp.eq.s32.totalorder %v1073, 1
          %v1106 = vsel %vm1074, %v770, %v914
          %v1107 = vsel %vm1075, %v772, %v915
          %v1108 = vsel %vm1076, %v775, %v916
          %v1109 = vsel %vm1077, %v777, %v917
          %v1110 = vsel %vm1078, %v780, %v918
          %v1111 = vsel %vm1079, %v782, %v919
          %v1112 = vsel %vm1080, %v785, %v920
          %v1113 = vsel %vm1081, %v787, %v921
          %v1114 = vsel %vm1082, %v790, %v922
          %v1115 = vsel %vm1083, %v792, %v923
          %v1116 = vsel %vm1084, %v795, %v924
          %v1117 = vsel %vm1085, %v797, %v925
          %v1118 = vsel %vm1086, %v800, %v926
          %v1119 = vsel %vm1087, %v802, %v927
          %v1120 = vsel %vm1088, %v805, %v928
          %v1121 = vsel %vm1089, %v807, %v929
          %v1122 = vsel %vm1090, %v810, %v930
          %v1123 = vsel %vm1091, %v812, %v931
          %v1124 = vsel %vm1092, %v815, %v932
          %v1125 = vsel %vm1093, %v817, %v933
          %v1126 = vsel %vm1094, %v820, %v934
          %v1127 = vsel %vm1095, %v822, %v935
          %v1128 = vsel %vm1096, %v825, %v936
          %v1129 = vsel %vm1097, %v827, %v937
          %v1130 = vsel %vm1098, %v830, %v938
          %v1131 = vsel %vm1099, %v832, %v939
          %v1132 = vsel %vm1100, %v835, %v940
          %v1133 = vsel %vm1101, %v837, %v941
          %v1134 = vsel %vm1102, %v840, %v942
          %v1135 = vsel %vm1103, %v842, %v943
          %v1136 = vsel %vm1104, %v845, %v944
          %v1137 = vsel %vm1105, %v847, %v945
          %1138 = vst [vmem:[#allocation8] sm:$0xff] %v1106
          %1139 = vst [vmem:[#allocation8 + $0x8] sm:$0xff] %v1107
          %1140 = vst [vmem:[#allocation8 + $0x10] sm:$0xff] %v1108
          %1141 = vst [vmem:[#allocation8 + $0x18] sm:$0xff] %v1109
          %1142 = vst [vmem:[#allocation8 + $0x20] sm:$0xff] %v1110
          %1143 = vst [vmem:[#allocation8 + $0x28] sm:$0xff] %v1111
          %1144 = vst [vmem:[#allocation8 + $0x30] sm:$0xff] %v1112
          %1145 = vst [vmem:[#allocation8 + $0x38] sm:$0xff] %v1113
          %1146 = vst [vmem:[#allocation8 + $0x40] sm:$0xff] %v1114
          %1147 = vst [vmem:[#allocation8 + $0x48] sm:$0xff] %v1115
          %1148 = vst [vmem:[#allocation8 + $0x50] sm:$0xff] %v1116
          %1149 = vst [vmem:[#allocation8 + $0x58] sm:$0xff] %v1117
          %1150 = vst [vmem:[#allocation8 + $0x60] sm:$0xff] %v1118
          %1151 = vst [vmem:[#allocation8 + $0x68] sm:$0xff] %v1119
          %1152 = vst [vmem:[#allocation8 + $0x70] sm:$0xff] %v1120
          %1153 = vst [vmem:[#allocation8 + $0x78] sm:$0xff] %v1121
          %1154 = vst [vmem:[#allocation8 + $0x80] sm:$0xff] %v1122
          %1155 = vst [vmem:[#allocation8 + $0x88] sm:$0xff] %v1123
          %1156 = vst [vmem:[#allocation8 + $0x90] sm:$0xff] %v1124
          %1157 = vst [vmem:[#allocation8 + $0x98] sm:$0xff] %v1125
          %1158 = vst [vmem:[#allocation8 + $0xa0] sm:$0xff] %v1126
          %1159 = vst [vmem:[#allocation8 + $0xa8] sm:$0xff] %v1127
          %1160 = vst [vmem:[#allocation8 + $0xb0] sm:$0xff] %v1128
          %1161 = vst [vmem:[#allocation8 + $0xb8] sm:$0xff] %v1129
          %1162 = vst [vmem:[#allocation8 + $0xc0] sm:$0xff] %v1130
          %1163 = vst [vmem:[#allocation8 + $0xc8] sm:$0xff] %v1131
          %1164 = vst [vmem:[#allocation8 + $0xd0] sm:$0xff] %v1132
          %1165 = vst [vmem:[#allocation8 + $0xd8] sm:$0xff] %v1133
          %1166 = vst [vmem:[#allocation8 + $0xe0] sm:$0xff] %v1134
          %1167 = vst [vmem:[#allocation8 + $0xe8] sm:$0xff] %v1135
          %1168 = vst [vmem:[#allocation8 + $0xf0] sm:$0xff] %v1136
          %1169 = vst [vmem:[#allocation8 + $0xf8] sm:$0xff] %v1137
        $region56: #{tpu_custom_call.1} parent=43 // pred_fallthru
          _
        // Predicated region
        $region57: #{tpu_custom_call.1} parent=43 // pred_check
          %p1170 = pneg %p196
        $region58: #{tpu_custom_call.1} parent=43 // pred_check_branch
          %1172 = sbr.rel (%p1170) target = $region60
        $region59: #{tpu_custom_call.1} parent=43 // pred_region
          %s1173 = smul.u32 32, %s34
          %1175 = vsyncadd [#allocation7], 0
          %s1176 = smul.addr %s1173, 8
          %s1177 = scalar_lea.hbm %s8, %s1176
          %s1178 = sshll.u32 [#allocation8], 4
          %s1179 = int_to_ptr.vmem [resolvable:$true] %s1178
          %s1180 = sshll.u32 %s1177, 4
          %s1181 = int_to_ptr.hbm [resolvable:$true] %s1180
          %1186 = dma.vmem_to_hbm [thread:$0]  %s1179, 4096, %s1181, [#allocation7], 128, 128, 8
        $region60: #{tpu_custom_call.1} parent=43 // pred_fallthru
          _
        // Predicated region
        $region61: #{tpu_custom_call.1} parent=43 // pred_check
          %p1187 = pneg %p196
        $region62: #{tpu_custom_call.1} parent=43 // pred_check_branch
          %1189 = sbr.rel (%p1187) target = $region64
        $region63: #{tpu_custom_call.1} parent=43 // pred_region
          %1191 = dma.done [#allocation7], 4096
        $region64: #{tpu_custom_call.1} parent=43 // pred_fallthru
          _
      $region44: #{tpu_custom_call.1} parent=5 // pred_fallthru
        _
      %p1192 = scmp.le.s32.totalorder 2, %s25
      // Predicated region
      $region65: #{tpu_custom_call.1} parent=5 // pred_check
        %p1193 = pneg %p1192
      $region66: #{tpu_custom_call.1} parent=5 // pred_check_branch
        %1195 = sbr.rel (%p1193) target = $region68
      $region67: #{tpu_custom_call.1} parent=5 // pred_region
        %s1196 = ssub.s32 %s25, 2
      $region68: #{tpu_custom_call.1} parent=5 // pred_fallthru
        _
    $region6: #{tpu_custom_call.1} parent=1 // loop_footer
      %s29 = sadd.s32 1, %s25
    $region7: #{tpu_custom_call.1} parent=1 // loop_footer_branch
      %24 = sbr.rel target = $region3
    $region8: #{tpu_custom_call.1} parent=1 // loop_exit
      _
    %1197 = vsyncpa [#allocation6], 1
    %s1198 = scalar_lea.sflag [#allocation6], 1
    %1199 = vsyncpa %s1198, 1
    %1200 = vsyncpa [#allocation7], 1
    %s1201 = scalar_lea.sflag [#allocation7], 1
    %1202 = vsyncpa %s1201, 1

</llo_original>
